<compile_context>
chip_gen: v6e
topology: v6e:2x2x1
jax: 0.10.0
libtpu: 0.0.40
codegen_flags: <defaults>
</compile_context>

<pallas_src>
import functools

import jax
import jax.numpy as jnp
from jax.experimental import pallas as pl
from jax.experimental.pallas import tpu as pltpu


def _disparity_regression_kernel(x_ref, o_ref, *, td):
    # x_ref: (TD, TH, W) probabilities for TD consecutive disparity levels.
    # o_ref: (TH, W)     f32 output tile, VMEM-resident across the D grid axis.
    d_blk = pl.program_id(2)

    @pl.when(d_blk == 0)
    def _():
        o_ref[...] = jnp.zeros_like(o_ref)

    # Base disparity value of this D-tile (traced scalar).
    d_base = (d_blk * td).astype(jnp.float32)

    # Statically unrolled FMA chain over the TD slices; accumulate directly
    # into the resident output tile (P3 accumulator, no scratch).
    acc = o_ref[...]
    for d in range(td):
        acc = acc + x_ref[d].astype(jnp.float32) * (d_base + jnp.float32(d))
    o_ref[...] = acc


def _aligned_divisors(n, align):
    """All divisors t of n with t % align == 0, ascending."""
    return [t for t in range(align, n + 1, align) if n % t == 0]


def disparity_regression(x, maxdisp, *, target_tile_bytes=6 * 1024 * 1024):
    """x: (B, D, H, W) float array with D == maxdisp. Returns (B, H, W) f32."""
    B, D, H, W = x.shape
    assert D == maxdisp, f"channel dim {D} must equal maxdisp {maxdisp}"

    itemsize = jnp.dtype(x.dtype).itemsize
    # Sublane alignment is dtype-aware: sub-32-bit dtypes pack rows in
    # sublane pairs/quads.
    h_align = {1: 32, 2: 16}.get(itemsize, 8)

    h_divs = _aligned_divisors(H, h_align) or [H]  # full-extent block is legal
    th = h_divs[0]  # smallest aligned H tile; grow the D tile first

    def in_tile_bytes(td_, th_):
        return td_ * th_ * W * itemsize

    d_divs = [t for t in range(1, D + 1) if D % t == 0]
    td = max((t for t in d_divs if in_tile_bytes(t, th) <= target_tile_bytes),
             default=1)

    if td == D:
        # Whole reduction fits in one grid step; now grow the H tile too.
        th = max((t for t in h_divs if in_tile_bytes(D, t) <= target_tile_bytes),
                 default=th)

    # Megacore: keep at least 2 programs on the parallel axes (v7x has 2 TCs).
    if B * (H // th) < 2:
        for t in reversed([t for t in h_divs if t < th]):
            if H // t >= 2:
                th = t
                break

    grid = (B, H // th, D // td)
    kernel = functools.partial(_disparity_regression_kernel, td=td)

    # Explicit scoped-VMEM budget: double-buffered input + double-buffered
    # output tile + headroom, so the 16/32 MiB defaults never bind.
    vmem_need = 2 * in_tile_bytes(td, th) + 2 * th * W * 4
    vmem_limit = int(min(max(vmem_need + (8 << 20), 32 << 20), 48 << 20))

    # TODO(synk): biggest end-to-end win is fusing the preceding softmax over D
    # into this kernel (online softmax + running weighted sum) to avoid a second
    # full HBM pass over the cost volume; also pad/reshape W to a 128 multiple
    # for fully unmasked output stores when W is narrow.
    return pl.pallas_call(
        kernel,
        out_shape=jax.ShapeDtypeStruct((B, H, W), jnp.float32),
        grid_spec=pltpu.PrefetchScalarGridSpec(
            num_scalar_prefetch=0,
            grid=grid,
            in_specs=[
                # (B, D, H, W) -> block (None, TD, TH, W); batch dim squeezed.
                pl.BlockSpec((None, td, th, W), lambda b, h, d: (b, d, h, 0)),
            ],
            # Output block ignores the d index -> resident accumulator tile.
            out_specs=pl.BlockSpec((None, th, W), lambda b, h, d: (b, h, 0)),
        ),
        compiler_params=pltpu.CompilerParams(
            dimension_semantics=("parallel", "parallel", "arbitrary"),
            vmem_limit_bytes=vmem_limit,
        ),
    )(x)


def disparity_regression_ref(x):
    """Pure-JAX reference mirroring the PyTorch forward (f32 accumulation)."""
    D = x.shape[1]
    disp = jnp.arange(D, dtype=jnp.float32).reshape(1, D, 1, 1)
    return jnp.sum(x.astype(jnp.float32) * disp, axis=1)


if __name__ == "__main__":
    key = jax.random.PRNGKey(0)
    B, D, H, W = 2, 4, 16, 16  # maxdisp = 4
    maxdisp = D

    # softmax over the disparity dim, as the module expects probabilities
    logits = jax.random.normal(key, (B, D, H, W), dtype=jnp.float32)
    x = jax.nn.softmax(logits, axis=1)

    out = jax.block_until_ready(disparity_regression(x, maxdisp))

    ref = disparity_regression_ref(x)
    assert out.shape == (B, H, W)
    assert out.dtype == jnp.float32
    assert jnp.allclose(out, ref, atol=1e-5, rtol=1e-5), "mismatch vs reference"

    print("KERNEL_OK")
</pallas_src>

<mosaic_0001>
module attributes {stable_mosaic.version = 11 : i64} {
  func.func @_disparity_regression_kernel(%arg0: i32, %arg1: i32, %arg2: i32, %arg3: memref<1x4x16x16xf32, #tpu.memory_space<vmem>>, %arg4: memref<1x16x16xf32, #tpu.memory_space<vmem>>) attributes {dimension_semantics = [#tpu.dimension_semantics<parallel>, #tpu.dimension_semantics<parallel>, #tpu.dimension_semantics<arbitrary>], iteration_bounds = array<i64: 2, 1, 1>, scalar_prefetch = 0 : i64, scratch_operands = 0 : i64, tpu.core_type = #tpu.core_type<tc>, window_params = [{transform_indices = @transform_0, window_bounds = array<i64: 1, 4, 16, 16>}, {transform_indices = @transform_1, window_bounds = array<i64: 1, 16, 16>}]} {
    %c0_i32 = arith.constant 0 : i32
    %0 = arith.cmpi eq, %arg2, %c0_i32 : i32
    %1 = arith.extui %0 : i1 to i32
    %c0_i32_0 = arith.constant 0 : i32
    %2 = arith.cmpi ne, %1, %c0_i32_0 : i32
    scf.if %2 {
      %cst_22 = arith.constant 0.000000e+00 : f32
      %34 = vector.broadcast %cst_22 : f32 to vector<16x16xf32>
      %c0_23 = arith.constant 0 : index
      %c0_24 = arith.constant 0 : index
      %c0_25 = arith.constant 0 : index
      %35 = vector.load %arg4[%c0_23, %c0_24, %c0_25] : memref<1x16x16xf32, #tpu.memory_space<vmem>>, vector<1x16x16xf32>
      %36 = vector.shape_cast %35 : vector<1x16x16xf32> to vector<16x16xf32>
      %37 = vector.shape_cast %34 : vector<16x16xf32> to vector<1x16x16xf32>
      tpu.vector_store %arg4[%c0_23, %c0_24, %c0_25], %37 {strides = array<i32>} : memref<1x16x16xf32, #tpu.memory_space<vmem>>, vector<1x16x16xf32>,
    } else {
    }
    %c4_i32 = arith.constant 4 : i32
    %3 = arith.muli %arg2, %c4_i32 : i32
    %4 = arith.sitofp %3 : i32 to f32
    %c0 = arith.constant 0 : index
    %c0_1 = arith.constant 0 : index
    %c0_2 = arith.constant 0 : index
    %5 = vector.load %arg4[%c0, %c0_1, %c0_2] : memref<1x16x16xf32, #tpu.memory_space<vmem>>, vector<1x16x16xf32>
    %6 = vector.shape_cast %5 : vector<1x16x16xf32> to vector<16x16xf32>
    %c0_3 = arith.constant 0 : index
    %c0_4 = arith.constant 0 : index
    %c0_5 = arith.constant 0 : index
    %c0_6 = arith.constant 0 : index
    %7 = vector.load %arg3[%c0_3, %c0_4, %c0_5, %c0_6] : memref<1x4x16x16xf32, #tpu.memory_space<vmem>>, vector<1x1x16x16xf32>
    %8 = vector.shape_cast %7 : vector<1x1x16x16xf32> to vector<16x16xf32>
    %cst = arith.constant 0.000000e+00 : f32
    %9 = arith.addf %4, %cst : f32
    %10 = vector.broadcast %9 : f32 to vector<16x16xf32>
    %11 = arith.mulf %8, %10 : vector<16x16xf32>
    %12 = arith.addf %6, %11 : vector<16x16xf32>
    %c0_7 = arith.constant 0 : index
    %c1 = arith.constant 1 : index
    %c0_8 = arith.constant 0 : index
    %c0_9 = arith.constant 0 : index
    %13 = vector.load %arg3[%c0_7, %c1, %c0_8, %c0_9] : memref<1x4x16x16xf32, #tpu.memory_space<vmem>>, vector<1x1x16x16xf32>
    %14 = vector.shape_cast %13 : vector<1x1x16x16xf32> to vector<16x16xf32>
    %cst_10 = arith.constant 1.000000e+00 : f32
    %15 = arith.addf %4, %cst_10 : f32
    %16 = vector.broadcast %15 : f32 to vector<16x16xf32>
    %17 = arith.mulf %14, %16 : vector<16x16xf32>
    %18 = arith.addf %12, %17 : vector<16x16xf32>
    %c0_11 = arith.constant 0 : index
    %c2 = arith.constant 2 : index
    %c0_12 = arith.constant 0 : index
    %c0_13 = arith.constant 0 : index
    %19 = vector.load %arg3[%c0_11, %c2, %c0_12, %c0_13] : memref<1x4x16x16xf32, #tpu.memory_space<vmem>>, vector<1x1x16x16xf32>
    %20 = vector.shape_cast %19 : vector<1x1x16x16xf32> to vector<16x16xf32>
    %cst_14 = arith.constant 2.000000e+00 : f32
    %21 = arith.addf %4, %cst_14 : f32
    %22 = vector.broadcast %21 : f32 to vector<16x16xf32>
    %23 = arith.mulf %20, %22 : vector<16x16xf32>
    %24 = arith.addf %18, %23 : vector<16x16xf32>
    %c0_15 = arith.constant 0 : index
    %c3 = arith.constant 3 : index
    %c0_16 = arith.constant 0 : index
    %c0_17 = arith.constant 0 : index
    %25 = vector.load %arg3[%c0_15, %c3, %c0_16, %c0_17] : memref<1x4x16x16xf32, #tpu.memory_space<vmem>>, vector<1x1x16x16xf32>
    %26 = vector.shape_cast %25 : vector<1x1x16x16xf32> to vector<16x16xf32>
    %cst_18 = arith.constant 3.000000e+00 : f32
    %27 = arith.addf %4, %cst_18 : f32
    %28 = vector.broadcast %27 : f32 to vector<16x16xf32>
    %29 = arith.mulf %26, %28 : vector<16x16xf32>
    %30 = arith.addf %24, %29 : vector<16x16xf32>
    %c0_19 = arith.constant 0 : index
    %c0_20 = arith.constant 0 : index
    %c0_21 = arith.constant 0 : index
    %31 = vector.load %arg4[%c0_19, %c0_20, %c0_21] : memref<1x16x16xf32, #tpu.memory_space<vmem>>, vector<1x16x16xf32>
    %32 = vector.shape_cast %31 : vector<1x16x16xf32> to vector<16x16xf32>
    %33 = vector.shape_cast %30 : vector<16x16xf32> to vector<1x16x16xf32>
    tpu.vector_store %arg4[%c0_19, %c0_20, %c0_21], %33 {strides = array<i32>} : memref<1x16x16xf32, #tpu.memory_space<vmem>>, vector<1x16x16xf32>,
    return
  }
  func.func @transform_0(%arg0: i32, %arg1: i32, %arg2: i32) -> (i32, i32, i32, i32) {
    %c0_i32 = arith.constant 0 : i32
    %c0_i32_0 = arith.constant 0 : i32
    return %arg0, %arg2, %arg1, %c0_i32 : i32, i32, i32, i32
  }
  func.func @transform_1(%arg0: i32, %arg1: i32, %arg2: i32) -> (i32, i32, i32) {
    %c0_i32 = arith.constant 0 : i32
    %c0_i32_0 = arith.constant 0 : i32
    return %arg0, %arg1, %c0_i32 : i32, i32, i32
  }
}

</mosaic_0001>

<llo_original>
// kernel: tpu_custom_call.1
$region0: #{tpu_custom_call.1}
  #allocation0 [shape = 'u32[]', space=smem, size = 0x4, offset = 0x4, fixed_abs, tag = 'smem constant byte address 0x4 - core index']
  #allocation1 [shape = 'u32[144,128]{1,0:T(1,128)}', space=vmem, size = 0x12000, scoped, tag = 'internal scratch']
  %s0 = inlined_call_operand.hbm [shape: f32[2,4,16,16], index: 0, kind: input, shape index: {}]
  %s1 = inlined_call_operand.hbm [shape: f32[2,16,16], index: 1, kind: output, shape index: {}]
  %s2 = sld [smem:[#allocation0]]
  $region45: #{tpu_custom_call.1} parent=0
    _
  %s4 = ssub.s32 1, %s2
  %s5 = scalar_select 0, %s4, %s2
  $region1: #{tpu_custom_call.1} parent=0
    #allocation2 [shape = 'u8[65536]{0}', space=vmem, size = 0x10000, scoped, tag = 'input window, operand 0']
    #allocation3 [shape = 's32[2]{0}', space=sflag, size = 0x8, scoped, tag = 'scoped memory for tpu_custom_call.1']
    #allocation4 [shape = 's32[2]{0}', space=sflag, size = 0x8, scoped, tag = 'scoped memory for tpu_custom_call.1']
    #allocation5 [shape = 'u8[16384]{0}', space=vmem, size = 0x4000, scoped, tag = 'output window, operand 0']
    %6 = vsyncpa [#allocation3], 0
    %s7 = scalar_lea.sflag [#allocation3], 1
    %8 = vsyncpa %s7, 0
    %9 = vsyncpa [#allocation4], 0
    %s10 = scalar_lea.sflag [#allocation4], 1
    %11 = vsyncpa %s10, 0
    loop: start=0, step=1, limit=4
    $region2: #{tpu_custom_call.1} parent=1 // loop_pre_header
      _
    $region3: #{tpu_custom_call.1} parent=1 // loop_header
      %s13 = sphi 0, %s17
      %p14 = scmp.ge.s32.totalorder %s13, 4
      %s20 = sphi 0, %s39
      %s21 = sphi 0, %s35
      %s22 = sphi 0, %s31
      %s23 = sphi 0, %s20
      %s24 = sphi 0, %s21
      %s25 = sphi 0, %s22
      %s26 = sphi 0, %s23
      %s27 = sphi 0, %s24
      %s28 = sphi 0, %s25
      %s46 = sphi 0, %s48
      %s49 = sphi 0, %s46
      %s50 = sphi 0, %s49
      %s66 = sphi 0, %s50
      %s74 = sphi 0, %s76
      %s77 = sphi 0, %s74
      %s78 = sphi 0, %s77
      %s94 = sphi 0, %s78
    $region4: #{tpu_custom_call.1} parent=1 // loop_header_branch
      %16 = sbr.rel (%p14) target = $region8
    $region5: #{tpu_custom_call.1} parent=1 // loop_body
      %s18 = ssub.s32 %s13, 1
      %s19 = ssub.s32 %s13, 2
      %s29 = sadd.s32 1, %s22
      %p30 = scmp.ge.s32.totalorder %s29, 1
      %s31 = scalar_select %p30, 0, %s29
      %s32 = sadd.s32 1, %s21
      %s33 = scalar_select %p30, %s32, %s21
      %p34 = scmp.ge.s32.totalorder %s33, 1
      %s35 = scalar_select %p34, 0, %s33
      %s36 = sadd.s32 1, %s20
      %s37 = scalar_select %p34, %s36, %s20
      %p38 = scmp.ge.s32.totalorder %s37, 2
      %s39 = scalar_select %p38, 0, %s37
      %s40 = ssub.s32 %s20, %s39
      %s41 = ssub.s32 %s22, %s31
      %s42 = sor.u32 %s40, %s41
      %s43 = ssub.s32 %s21, %s35
      %s44 = sor.u32 %s42, %s43
      %p45 = scmp.eq.s32.totalorder %s44, 0
      %s47 = sadd.s32 %s46, 1
      %s48 = scalar_select %p45, %s46, %s47
      %p51 = pneg %p45
      %p52 = scmp.eq.s32.totalorder %s13, 1
      %p53 = por %p51, %p52
      %p54 = scmp.ne.s32.totalorder %s46, %s49
      %p55 = scmp.eq.s32.totalorder %s13, 0
      %p56 = por %p54, %p55
      %p57 = scmp.ne.s32.totalorder %s46, %s49
      %p58 = scmp.eq.s32.totalorder %s18, 1
      %p59 = por %p57, %p58
      %p60 = scmp.ne.s32.totalorder %s49, %s50
      %p61 = scmp.eq.s32.totalorder %s18, 0
      %p62 = por %p60, %p61
      %p63 = scmp.ne.s32.totalorder %s49, %s50
      %p64 = scmp.eq.s32.totalorder %s19, 1
      %p65 = por %p63, %p64
      %p67 = scmp.ne.s32.totalorder %s50, %s66
      %p68 = scmp.eq.s32.totalorder %s19, 0
      %p69 = por %p67, %p68
      %s70 = ssub.s32 %s20, %s39
      %s71 = ssub.s32 %s21, %s35
      %s72 = sor.u32 %s70, %s71
      %p73 = scmp.eq.s32.totalorder %s72, 0
      %s75 = sadd.s32 %s74, 1
      %s76 = scalar_select %p73, %s74, %s75
      %p79 = pneg %p73
      %p80 = scmp.eq.s32.totalorder %s13, 1
      %p81 = por %p79, %p80
      %p82 = scmp.ne.s32.totalorder %s74, %s77
      %p83 = scmp.eq.s32.totalorder %s13, 0
      %p84 = por %p82, %p83
      %p85 = scmp.ne.s32.totalorder %s74, %s77
      %p86 = scmp.eq.s32.totalorder %s18, 1
      %p87 = por %p85, %p86
      %p88 = scmp.ne.s32.totalorder %s77, %s78
      %p89 = scmp.eq.s32.totalorder %s18, 0
      %p90 = por %p88, %p89
      %p91 = scmp.ne.s32.totalorder %s77, %s78
      %p92 = scmp.eq.s32.totalorder %s19, 1
      %p93 = por %p91, %p92
      %p95 = scmp.ne.s32.totalorder %s78, %s94
      %p96 = scmp.eq.s32.totalorder %s19, 0
      %p97 = por %p95, %p96
      %p98 = scmp.le.s32.totalorder 1, %s13
      %p99 = scmp.lt.s32.totalorder %s13, 3
      %p100 = pnand %p98, %p99
      %p101 = pneg %p100
      // Predicated region
      $region9: #{tpu_custom_call.1} parent=5 // pred_check
        _
      $region10: #{tpu_custom_call.1} parent=5 // pred_check_branch
        %103 = sbr.rel (%p100) target = $region12
      $region11: #{tpu_custom_call.1} parent=5 // pred_region
        %s104 = ssub.s32 %s13, 1
      $region12: #{tpu_custom_call.1} parent=5 // pred_fallthru
        _
      %p105 = scmp.lt.s32.totalorder %s13, 2
      // Predicated region
      $region13: #{tpu_custom_call.1} parent=5 // pred_check
        %p106 = pneg %p105
      $region14: #{tpu_custom_call.1} parent=5 // pred_check_branch
        %108 = sbr.rel (%p106) target = $region16
      $region15: #{tpu_custom_call.1} parent=5 // pred_region
        // Predicated region
        $region17: #{tpu_custom_call.1} parent=15 // pred_check
          %p109 = pneg %p56
        $region18: #{tpu_custom_call.1} parent=15 // pred_check_branch
          %111 = sbr.rel (%p109) target = $region20
        $region19: #{tpu_custom_call.1} parent=15 // pred_region
          %s112 = sand.u32 %s46, 1
          %s113 = scalar_lea.sflag [#allocation3], %s112
          %s114 = sand.u32 %s46, 1
          %s115 = smul.addr %s114, 64
          %s116 = scalar_lea.vmem [#allocation2], %s115
          %s117 = smul.u32 4, %s22
          %s118 = smul.u32 2, %s21
          %s120 = ssub.s32 1024, 1024
          %121 = vsyncadd %s113, %s120
          %s122 = smul.addr %s117, 2
          %s123 = sadd.s32 %s118, %s122
          %s124 = smul.addr %s20, 8
          %s125 = sadd.s32 %s123, %s124
          %s126 = smul.addr %s125, 128
          %s127 = scalar_lea.hbm %s0, %s126
          %s128 = sshll.u32 %s116, 4
          %s129 = int_to_ptr.vmem [resolvable:$true] %s128
          %134 = dma.hbm_to_vmem [thread:$0]  %s127, 1024, %s129, %s113, 128, 128, 8
        $region20: #{tpu_custom_call.1} parent=15 // pred_fallthru
          _
      $region16: #{tpu_custom_call.1} parent=5 // pred_fallthru
        _
      %p135 = scmp.le.s32.totalorder 1, %s13
      %p136 = scmp.lt.s32.totalorder %s13, 3
      %p137 = pnand %p135, %p136
      %p138 = pneg %p137
      // Predicated region
      $region21: #{tpu_custom_call.1} parent=5 // pred_check
        _
      $region22: #{tpu_custom_call.1} parent=5 // pred_check_branch
        %140 = sbr.rel (%p137) target = $region24
      $region23: #{tpu_custom_call.1} parent=5 // pred_region
        %s141 = ssub.s32 %s13, 1
        %s142 = sand.u32 %s49, 1
        %s143 = scalar_lea.sflag [#allocation3], %s142
        %s144 = sand.u32 %s49, 1
        %s145 = smul.addr %s144, 64
        %s146 = scalar_lea.vmem [#allocation2], %s145
        // Predicated region
        $region25: #{tpu_custom_call.1} parent=23 // pred_check
          %p147 = pneg %p62
        $region26: #{tpu_custom_call.1} parent=23 // pred_check_branch
          %149 = sbr.rel (%p147) target = $region28
        $region27: #{tpu_custom_call.1} parent=23 // pred_region
          %150 = dma.done %s143, 1024
        $region28: #{tpu_custom_call.1} parent=23 // pred_fallthru
          _
        %s151 = sand.u32 %s49, 1
        %s152 = scalar_lea.sflag [#allocation3], %s151
        %s153 = sand.u32 %s49, 1
        %s154 = smul.addr %s153, 64
        %s155 = scalar_lea.vmem [#allocation2], %s154
        %p156 = pneg %p62
        %p157 = pneg %p59
        %p158 = pneg %p90
        %p159 = pneg %p87
        %s160 = sand.u32 %s77, 1
        %s161 = scalar_lea.sflag [#allocation4], %s160
        %s162 = sand.u32 %s77, 1
        %s163 = smul.addr %s162, 16
        %s164 = scalar_lea.vmem [#allocation5], %s163
        %s165 = smul.u32 4, %s25
        %s166 = smul.u32 2, %s24
        %s167 = smul.u32 2, %s24
        %p168 = scmp.eq.s32.totalorder %s25, 0
        // Predicated region
        $region29: #{tpu_custom_call.1} parent=23 // pred_check
          %p169 = pneg %p168
        $region30: #{tpu_custom_call.1} parent=23 // pred_check_branch
          %171 = sbr.rel (%p169) target = $region32
        $region31: #{tpu_custom_call.1} parent=23 // pred_region
          %vm172 = vcmask 130048
          %173 = vst.msk [vmem:[%s164] sm:$0xff] %vm172, 0.0
          %174 = vst.msk [vmem:[%s164 + $0x8] sm:$0xff] %vm172, 0.0
        $region32: #{tpu_custom_call.1} parent=23 // pred_fallthru
          _
        %s175 = smul.u32 %s25, 4
        %s176 = scvt.s32.f32 %s175
        %v177 = vld [vmem:[%s164] sm:$0xff]
        %v178 = vld [vmem:[%s164 + $0x8] sm:$0xff]
        %v179 = vld [vmem:[%s146] sm:$0xff]
        %v180 = vld [vmem:[%s146 + $0x8] sm:$0xff]
        %s181 = sadd.f32 %s176, 0.0
        %v182 = vstv %s181
        %v183 = vmul.f32 %v179, %v182
        %v184 = vmul.f32 %v180, %v182
        %v185 = vadd.f32 %v177, %v183
        %v186 = vadd.f32 %v178, %v184
        %s187 = scalar_lea.vmem %s146, 16 [#allocation2]
        %v188 = vld [vmem:[%s187] sm:$0xff]
        %v189 = vld [vmem:[%s187 + $0x8] sm:$0xff]
        %s190 = sadd.f32 %s176, 1.0
        %v191 = vstv %s190
        %v192 = vmul.f32 %v188, %v191
        %v193 = vmul.f32 %v189, %v191
        %v194 = vadd.f32 %v185, %v192
        %v195 = vadd.f32 %v186, %v193
        %s196 = scalar_lea.vmem %s146, 32 [#allocation2]
        %v197 = vld [vmem:[%s196] sm:$0xff]
        %v198 = vld [vmem:[%s196 + $0x8] sm:$0xff]
        %s199 = sadd.f32 %s176, 2.0
        %v200 = vstv %s199
        %v201 = vmul.f32 %v197, %v200
        %v202 = vmul.f32 %v198, %v200
        %v203 = vadd.f32 %v194, %v201
        %v204 = vadd.f32 %v195, %v202
        %s205 = scalar_lea.vmem %s146, 48 [#allocation2]
        %v206 = vld [vmem:[%s205] sm:$0xff]
        %v207 = vld [vmem:[%s205 + $0x8] sm:$0xff]
        %s208 = sadd.f32 %s176, 3.0
        %v209 = vstv %s208
        %v210 = vmul.f32 %v206, %v209
        %v211 = vmul.f32 %v207, %v209
        %v212 = vadd.f32 %v203, %v210
        %v213 = vadd.f32 %v204, %v211
        %vm214 = vcmask 130048
        %215 = vst.msk [vmem:[%s164] sm:$0xff] %vm214, %v212
        %216 = vst.msk [vmem:[%s164 + $0x8] sm:$0xff] %vm214, %v213
        %s217 = sand.u32 %s77, 1
        %s218 = scalar_lea.sflag [#allocation4], %s217
        %s219 = sand.u32 %s77, 1
        %s220 = smul.addr %s219, 16
        %s221 = scalar_lea.vmem [#allocation5], %s220
        // Predicated region
        $region33: #{tpu_custom_call.1} parent=23 // pred_check
          %p222 = pneg %p87
        $region34: #{tpu_custom_call.1} parent=23 // pred_check_branch
          %224 = sbr.rel (%p222) target = $region36
        $region35: #{tpu_custom_call.1} parent=23 // pred_region
          %s225 = smul.u32 2, %s24
          %s227 = ssub.s32 256, 256
          %228 = vsyncadd %s218, %s227
          %s229 = smul.addr %s23, 2
          %s230 = sadd.s32 %s225, %s229
          %s231 = smul.addr %s230, 128
          %s232 = scalar_lea.hbm %s1, %s231
          %s233 = sshll.u32 %s221, 4
          %s234 = int_to_ptr.vmem [resolvable:$true] %s233
          %239 = dma.vmem_to_hbm [thread:$0]  %s234, 256, %s232, %s218, 128, 128, 8
        $region36: #{tpu_custom_call.1} parent=23 // pred_fallthru
          _
      $region24: #{tpu_custom_call.1} parent=5 // pred_fallthru
        _
      %p240 = scmp.le.s32.totalorder 2, %s13
      // Predicated region
      $region37: #{tpu_custom_call.1} parent=5 // pred_check
        %p241 = pneg %p240
      $region38: #{tpu_custom_call.1} parent=5 // pred_check_branch
        %243 = sbr.rel (%p241) target = $region40
      $region39: #{tpu_custom_call.1} parent=5 // pred_region
        %s244 = ssub.s32 %s13, 2
        // Predicated region
        $region41: #{tpu_custom_call.1} parent=39 // pred_check
          %p245 = pneg %p93
        $region42: #{tpu_custom_call.1} parent=39 // pred_check_branch
          %247 = sbr.rel (%p245) target = $region44
        $region43: #{tpu_custom_call.1} parent=39 // pred_region
          %s248 = sand.u32 %s78, 1
          %s249 = scalar_lea.sflag [#allocation4], %s248
          %s250 = sand.u32 %s78, 1
          %s251 = smul.addr %s250, 16
          %s252 = scalar_lea.vmem [#allocation5], %s251
          %253 = dma.done %s249, 256
        $region44: #{tpu_custom_call.1} parent=39 // pred_fallthru
          _
      $region40: #{tpu_custom_call.1} parent=5 // pred_fallthru
        _
    $region6: #{tpu_custom_call.1} parent=1 // loop_footer
      %s17 = sadd.s32 1, %s13
    $region7: #{tpu_custom_call.1} parent=1 // loop_footer_branch
      %12 = sbr.rel target = $region3
    $region8: #{tpu_custom_call.1} parent=1 // loop_exit
      _
    %254 = vsyncpa [#allocation3], 1
    %s255 = scalar_lea.sflag [#allocation3], 1
    %256 = vsyncpa %s255, 1
    %257 = vsyncpa [#allocation4], 1
    %s258 = scalar_lea.sflag [#allocation4], 1
    %259 = vsyncpa %s258, 1

</llo_original>
